<compile_context>
chip_gen: v7x
topology: tpu7x:2x2x1
jax: 0.10.0
libtpu: 0.0.40
codegen_flags: <defaults>
</compile_context>

<pallas_src>
import functools

import jax
import jax.numpy as jnp
from jax.experimental import pallas as pl
from jax.experimental.pallas import tpu as pltpu


def _cdiv(a, b):
    return -(-a // b)


def _round_up(a, b):
    return _cdiv(a, b) * b


def _tpu_defaults():
    """Best-effort TPU generation probe with conservative fallbacks.

    Returns (vmem_limit_bytes, n_tensorcores_per_grid, bf16_compute_ok).
    """
    kind = ""
    try:
        kind = (jax.devices()[0].device_kind or "").lower()
    except Exception:
        pass
    is_v7 = "v7" in kind
    is_v6 = "v6" in kind
    is_v5e = ("v5e" in kind) or ("v5 lite" in kind) or ("v5lite" in kind)
    is_v5p = ("v5p" in kind) or (("v5" in kind) and not is_v5e)
    is_v4 = "v4" in kind
    known_128mib = is_v6 or is_v5e or is_v5p or is_v4
    # v7x has only 64 MiB VMEM per TensorCore -> keep the scoped limit well
    # below it; unknown chips stay conservative too.
    vmem_limit = (64 << 20) if (known_128mib and not is_v7) else (48 << 20)
    # Chips where one Pallas grid spans 2 TensorCores via a "parallel" axis.
    n_tc = 2 if (is_v7 or is_v4 or is_v5p) else 1
    # Packed bf16 VPU/EUP only on v6e / v7x.
    bf16_ok = is_v6 or is_v7
    return vmem_limit, n_tc, bf16_ok


def _refined_reciprocal(x):
    """EUP approximate reciprocal + one Newton-Raphson step (~f32 accurate)."""
    r = pl.reciprocal(x, approx=True)
    return r * (2.0 - x * r)


def _dice_partial_kernel(pred_ref, tgt_ref, inter_ref, den_ref, *,
                         num_classes, ignore_index, exponent, compute_dtype):
    """Accumulates per-(sample, class) partial dice sums for one HW tile.

    pred_ref  : [N, C, T] logits (native dtype, cast to compute_dtype in VMEM)
    tgt_ref   : [N, T]    integer labels (native dtype; may hold ignore / pad)
    inter_ref : [1, N, C] f32   running sum of softmax * onehot * valid
    den_ref   : [1, N, C] f32   running sum of softmax**exponent + onehot
    """
    h = pl.program_id(1)

    @pl.when(h == 0)
    def _init():
        inter_ref[...] = jnp.zeros_like(inter_ref)
        den_ref[...] = jnp.zeros_like(den_ref)

    p = pred_ref[...].astype(compute_dtype)                     # [N, C, T]
    t = tgt_ref[...].astype(jnp.int32)                          # [N, T]

    # Softmax over the class (sublane) axis.  The divide is hoisted to the
    # reduced [N, 1, T] denominator: EUP approx reciprocal + one Newton step,
    # then a broadcast multiply instead of a per-element divide over [N,C,T].
    m = jnp.max(p, axis=1, keepdims=True)                       # [N, 1, T]
    e = jnp.exp(p - m)                                          # [N, C, T]
    s = jnp.sum(e.astype(jnp.float32), axis=1, keepdims=True)   # f32 [N, 1, T]
    inv = _refined_reciprocal(s).astype(compute_dtype)
    sm = e * inv                                                # [N, C, T]

    # one_hot(clamp(target, 0, C-1)) kept as a boolean mask (no f32 expand).
    cls = jax.lax.broadcasted_iota(jnp.int32, (1, num_classes, 1), 1)
    tc = jnp.clip(t, 0, num_classes - 1)[:, None, :]            # [N, 1, T]
    onehot = tc == cls                                          # [N, C, T] bool
    valid = (t != ignore_index)[:, None, :]                     # [N, 1, T] bool

    # softmax ** exponent: exponent == 2 is an exact square (no transcendental).
    if float(exponent) == 2.0:
        sm_pow = sm * sm
    else:
        sm_pow = sm ** exponent

    # Numerator: sum(softmax * onehot * valid), mask fused as a boolean select.
    # Denominator: sum(softmax**exponent + onehot**exponent); onehot**p == onehot.
    # Both lane reductions accumulate in f32 even when compute_dtype is bf16.
    num_mask = onehot & valid
    inter = jnp.sum(jnp.where(num_mask, sm, 0).astype(jnp.float32), axis=2)
    den = jnp.sum(sm_pow.astype(jnp.float32) + jnp.where(onehot, 1.0, 0.0),
                  axis=2)
    # NOTE: these two jnp.sum(axis=2) could be offloaded to the idle MXU with a
    # ones-vector dot; deferred pending bundle verification (and to keep the
    # exact f32 path bit-tight against the reference).

    inter_ref[...] += inter[None]
    den_ref[...] += den[None]


def dice_loss(prediction, target, *, smooth=1.0, exponent=2.0,
              reduction='mean', class_weight=None, scale_factor=1.0,
              ignore_index=255, lowest_loss_value=None,
              tile_hw=None, num_parallel_chunks=None,
              cast_pred_to_bf16=False):
    """JAX/Pallas equivalent of ssseg DiceLoss.forward.

    prediction: [N, C, H, W] float logits (NCHW; bf16 stays bf16 end-to-end).
    target    : [N, H, W] integer labels (streamed in their native dtype).
    """
    N, C, H, W = prediction.shape
    HW = H * W

    vmem_limit, n_tc, bf16_ok = _tpu_defaults()

    pred = prediction.reshape(N, C, HW)
    if cast_pred_to_bf16 and pred.dtype == jnp.float32:
        # Optional: halve the dominant HBM stream (main lever on v5e).
        pred = pred.astype(jnp.bfloat16)
    tgt = target.reshape(N, HW)
    if not jnp.issubdtype(tgt.dtype, jnp.integer):
        tgt = tgt.astype(jnp.int32)

    # Elementwise math in bf16 only when the logits are already bf16 and the
    # chip has a packed-bf16 VPU/EUP (v6e/v7x); exact f32 otherwise.
    compute_dtype = (jnp.bfloat16
                     if (pred.dtype == jnp.bfloat16 and bf16_ok)
                     else jnp.float32)

    # --- tile sizing: budget the true VMEM working set ----------------------
    pred_bytes = jnp.dtype(pred.dtype).itemsize
    tgt_bytes = jnp.dtype(tgt.dtype).itemsize
    cbytes = jnp.dtype(compute_dtype).itemsize
    c_pad_c = _round_up(C, 8 * (4 // cbytes))   # sublane-padded C: 8 f32 / 16 bf16
    c_pad_8 = _round_up(C, 8)
    per_lane_bytes = (
        2 * N * (C * pred_bytes + tgt_bytes)    # 2x double-buffered streamed inputs
        + 4 * N * c_pad_c * cbytes              # compute-dtype [N, C, T] temporaries
        + 3 * N * c_pad_8 * 4                   # f32 reduction staging + masks
        + 8 * N * 4)                            # [N, 1, T] temporaries
    vmem_budget = (vmem_limit * 7) // 10        # headroom for compiler scratch
    if tile_hw is None:
        tile_hw = (vmem_budget // per_lane_bytes) // 128 * 128
        # Pipelining benefit saturates around 1-2k lanes per tile.
        tile_hw = min(tile_hw, 2048)
    tile_hw = int(max(128, _round_up(int(tile_hw), 128)))
    tile_hw = min(tile_hw, _round_up(HW, 128))

    n_tiles = _cdiv(HW, tile_hw)
    if num_parallel_chunks is None:
        num_parallel_chunks = n_tc              # 2 on v7x / megacore, else 1
    P = max(1, min(int(num_parallel_chunks), n_tiles))
    tiles_per_chunk = _cdiv(n_tiles, P)
    hw_pad = P * tiles_per_chunk * tile_hw
    pad = hw_pad - HW

    if pad > 0:
        # Zero-logit / ignore-label padding; its exactly-known denominator
        # contribution is subtracted analytically in the epilogue below.
        pred = jnp.pad(pred, ((0, 0), (0, 0), (0, pad)))
        ii = int(ignore_index)
        info = jnp.iinfo(tgt.dtype)
        if not (info.min <= ii <= info.max):
            tgt = tgt.astype(jnp.int32)
        tgt = jnp.pad(tgt, ((0, 0), (0, pad)), constant_values=ii)

    kernel = functools.partial(
        _dice_partial_kernel,
        num_classes=C,
        ignore_index=int(ignore_index),
        exponent=float(exponent),
        compute_dtype=compute_dtype)

    out_spec = pl.BlockSpec((1, N, C), lambda p_, h_: (p_, 0, 0))
    inter_parts, den_parts = pl.pallas_call(
        kernel,
        out_shape=(jax.ShapeDtypeStruct((P, N, C), jnp.float32),
                   jax.ShapeDtypeStruct((P, N, C), jnp.float32)),
        grid=(P, tiles_per_chunk),
        in_specs=[
            pl.BlockSpec((N, C, tile_hw),
                         lambda p_, h_: (0, 0, p_ * tiles_per_chunk + h_)),
            pl.BlockSpec((N, tile_hw),
                         lambda p_, h_: (0, p_ * tiles_per_chunk + h_)),
        ],
        out_specs=(out_spec, out_spec),
        compiler_params=pltpu.CompilerParams(
            dimension_semantics=("parallel", "arbitrary"),
            vmem_limit_bytes=int(vmem_limit)),
    )(pred, tgt)

    # --- tiny nonlinear epilogue in plain JAX --------------------------------
    inter = jnp.sum(inter_parts, axis=0)        # [N, C]
    den = jnp.sum(den_parts, axis=0)            # [N, C]

    if pad > 0:
        # Padded lanes: logits == 0  -> softmax == 1/C exactly;
        # label == ignore_index      -> numerator already killed by `valid`,
        # clamped one-hot hits class clamp(ignore_index, 0, C-1).
        den = den - jnp.float32(pad * (1.0 / C) ** float(exponent))
        pad_cls = min(max(int(ignore_index), 0), C - 1)
        den = den.at[:, pad_cls].add(-jnp.float32(pad))

    loss_nc = 1.0 - (2.0 * inter + smooth) / (den + smooth)

    if class_weight is not None:
        cw = jnp.asarray(class_weight, dtype=jnp.float32)
        loss_nc = loss_nc * cw[None, :]
    if 0 <= int(ignore_index) < C:
        keep = (jnp.arange(C) != int(ignore_index)).astype(jnp.float32)
        loss_nc = loss_nc * keep[None, :]
    loss = jnp.sum(loss_nc, axis=1) / C          # [N]

    if reduction == 'mean':
        loss = loss.mean()
    elif reduction == 'sum':
        loss = loss.sum()
    else:
        assert reduction == 'none'
    loss = loss * scale_factor
    if lowest_loss_value is not None:
        loss = jnp.abs(loss - lowest_loss_value) + lowest_loss_value
    return loss


def _dice_loss_ref(prediction, target, *, smooth=1.0, exponent=2.0,
                   reduction='mean', class_weight=None, scale_factor=1.0,
                   ignore_index=255, lowest_loss_value=None):
    """Pure-JAX reference mirroring the PyTorch module."""
    N, C = prediction.shape[0], prediction.shape[1]
    sm = jax.nn.softmax(prediction.astype(jnp.float32), axis=1)
    onehot = jax.nn.one_hot(jnp.clip(target.astype(jnp.int32), 0, C - 1), C,
                            dtype=jnp.float32)
    valid = (target != ignore_index).astype(jnp.float32).reshape(N, -1)
    total = 0.0
    for i in range(C):
        if i == ignore_index:
            continue
        p = sm[:, i].reshape(N, -1)
        t = onehot[..., i].reshape(N, -1)
        num = jnp.sum(p * t * valid, axis=1) * 2 + smooth
        den = jnp.sum(p ** exponent + t ** exponent, axis=1) + smooth
        d = 1.0 - num / den
        if class_weight is not None:
            d = d * class_weight[i]
        total = total + d
    loss = total / C
    if reduction == 'mean':
        loss = loss.mean()
    elif reduction == 'sum':
        loss = loss.sum()
    loss = loss * scale_factor
    if lowest_loss_value is not None:
        loss = jnp.abs(loss - lowest_loss_value) + lowest_loss_value
    return loss


if __name__ == "__main__":
    key = jax.random.PRNGKey(0)
    k1, k2, k3, k4, k5, k6, k7 = jax.random.split(key, 7)

    # Case 1: HW multiple of the tile -> multi-step accumulation along the
    # "arbitrary" axis (plus the TC-parallel chunk axis), ignore labels, mean.
    N, C, H, W = 2, 4, 32, 32
    prediction = jax.random.normal(k1, (N, C, H, W), dtype=jnp.float32)
    target = jax.random.randint(k2, (N, H, W), 0, C, dtype=jnp.int32)
    ignore_mask = jax.random.bernoulli(k3, 0.1, (N, H, W))
    target = jnp.where(ignore_mask, 255, target)

    out = jax.block_until_ready(dice_loss(prediction, target, tile_hw=128))
    ref = jax.block_until_ready(_dice_loss_ref(prediction, target))
    assert jnp.allclose(out, ref, rtol=1e-5, atol=1e-5), (out, ref)

    # Case 2: HW not a multiple of 128 -> padded tail corrected analytically in
    # the epilogue; class_weight / reduction='none' / scale / lowest_loss_value.
    N2, C2, H2, W2 = 2, 5, 20, 20
    pred2 = jax.random.normal(k4, (N2, C2, H2, W2), dtype=jnp.float32)
    tgt2 = jax.random.randint(k5, (N2, H2, W2), 0, C2, dtype=jnp.int32)
    cw = [0.5, 1.0, 1.5, 2.0, 0.25]
    out2 = jax.block_until_ready(dice_loss(
        pred2, tgt2, reduction='none', class_weight=cw, scale_factor=0.5,
        lowest_loss_value=0.3, tile_hw=128))
    ref2 = jax.block_until_ready(_dice_loss_ref(
        pred2, tgt2, reduction='none', class_weight=cw, scale_factor=0.5,
        lowest_loss_value=0.3))
    assert jnp.allclose(out2, ref2, rtol=1e-5, atol=1e-5), (out2, ref2)

    # Case 3: bf16 logits + uint8 labels, auto tile sizing -> exercises the
    # packed-bf16 compute path (on v6e/v7x; exact f32 path elsewhere) and the
    # narrow native-dtype label stream.  Looser tolerance for bf16 math.
    N3, C3, H3, W3 = 2, 4, 24, 24
    pred3 = jax.random.normal(
        k6, (N3, C3, H3, W3), dtype=jnp.float32).astype(jnp.bfloat16)
    tgt3 = jax.random.randint(
        k7, (N3, H3, W3), 0, C3, dtype=jnp.int32).astype(jnp.uint8)
    out3 = jax.block_until_ready(dice_loss(pred3, tgt3))
    ref3 = jax.block_until_ready(_dice_loss_ref(pred3, tgt3))
    assert jnp.allclose(out3, ref3, rtol=5e-2, atol=2e-2), (out3, ref3)

    print("KERNEL_OK")
</pallas_src>

<mosaic_0001>
module attributes {stable_mosaic.version = 11 : i64} {
  func.func @_dice_partial_kernel(%arg0: i32, %arg1: i32, %arg2: memref<2x4x128xf32, #tpu.memory_space<vmem>>, %arg3: memref<2x128xi32, #tpu.memory_space<vmem>>, %arg4: memref<1x2x4xf32, #tpu.memory_space<vmem>>, %arg5: memref<1x2x4xf32, #tpu.memory_space<vmem>>) attributes {dimension_semantics = [#tpu.dimension_semantics<parallel>, #tpu.dimension_semantics<arbitrary>], iteration_bounds = array<i64: 1, 8>, scalar_prefetch = 0 : i64, scratch_operands = 0 : i64, tpu.core_type = #tpu.core_type<tc>, window_params = [{transform_indices = @transform_0, window_bounds = array<i64: 2, 4, 128>}, {transform_indices = @transform_1, window_bounds = array<i64: 2, 128>}, {transform_indices = @transform_2, window_bounds = array<i64: 1, 2, 4>}, {transform_indices = @transform_3, window_bounds = array<i64: 1, 2, 4>}]} {
    %c0_i32 = arith.constant 0 : i32
    %0 = arith.cmpi eq, %arg1, %c0_i32 : i32
    %1 = arith.extui %0 : i1 to i32
    %c0_i32_0 = arith.constant 0 : i32
    %2 = arith.cmpi ne, %1, %c0_i32_0 : i32
    scf.if %2 {
      %cst_25 = arith.constant 0.000000e+00 : f32
      %51 = vector.broadcast %cst_25 : f32 to vector<1x2x4xf32>
      %c0_26 = arith.constant 0 : index
      %c0_27 = arith.constant 0 : index
      %c0_28 = arith.constant 0 : index
      %52 = vector.load %arg4[%c0_26, %c0_27, %c0_28] : memref<1x2x4xf32, #tpu.memory_space<vmem>>, vector<1x2x4xf32>
      tpu.vector_store %arg4[%c0_26, %c0_27, %c0_28], %51 {strides = array<i32>} : memref<1x2x4xf32, #tpu.memory_space<vmem>>, vector<1x2x4xf32>,
      %cst_29 = arith.constant 0.000000e+00 : f32
      %53 = vector.broadcast %cst_29 : f32 to vector<1x2x4xf32>
      %c0_30 = arith.constant 0 : index
      %c0_31 = arith.constant 0 : index
      %c0_32 = arith.constant 0 : index
      %54 = vector.load %arg5[%c0_30, %c0_31, %c0_32] : memref<1x2x4xf32, #tpu.memory_space<vmem>>, vector<1x2x4xf32>
      tpu.vector_store %arg5[%c0_30, %c0_31, %c0_32], %53 {strides = array<i32>} : memref<1x2x4xf32, #tpu.memory_space<vmem>>, vector<1x2x4xf32>,
    } else {
    }
    %c0 = arith.constant 0 : index
    %c0_1 = arith.constant 0 : index
    %c0_2 = arith.constant 0 : index
    %3 = vector.load %arg2[%c0, %c0_1, %c0_2] : memref<2x4x128xf32, #tpu.memory_space<vmem>>, vector<2x4x128xf32>
    %c0_3 = arith.constant 0 : index
    %c0_4 = arith.constant 0 : index
    %4 = vector.load %arg3[%c0_3, %c0_4] : memref<2x128xi32, #tpu.memory_space<vmem>>, vector<2x128xi32>
    %cst = arith.constant dense<0xFF800000> : vector<2x128xf32>
    %5 = vector.multi_reduction <maximumf>, %3, %cst [1] : vector<2x4x128xf32> to vector<2x128xf32>
    %6 = vector.shape_cast %5 : vector<2x128xf32> to vector<2x1x128xf32>
    %7 = vector.broadcast %6 : vector<2x1x128xf32> to vector<2x4x128xf32>
    %8 = arith.subf %3, %7 : vector<2x4x128xf32>
    %9 = math.exp %8 : vector<2x4x128xf32>
    %cst_5 = arith.constant dense<0.000000e+00> : vector<2x128xf32>
    %10 = vector.multi_reduction <add>, %9, %cst_5 [1] : vector<2x4x128xf32> to vector<2x128xf32>
    %11 = vector.shape_cast %10 : vector<2x128xf32> to vector<2x1x128xf32>
    %12 = tpu.reciprocal %11 {approx = true} : vector<2x1x128xf32> -> vector<2x1x128xf32>
    %13 = arith.mulf %11, %12 : vector<2x1x128xf32>
    %cst_6 = arith.constant 2.000000e+00 : f32
    %14 = vector.broadcast %cst_6 : f32 to vector<2x1x128xf32>
    %15 = arith.subf %14, %13 : vector<2x1x128xf32>
    %16 = arith.mulf %12, %15 : vector<2x1x128xf32>
    %17 = vector.broadcast %16 : vector<2x1x128xf32> to vector<2x4x128xf32>
    %18 = arith.mulf %9, %17 : vector<2x4x128xf32>
    %19 = tpu.iota {dimensions = array<i32: 1>} : vector<1x4x1xi32>
    %c0_i32_7 = arith.constant 0 : i32
    %c3_i32 = arith.constant 3 : i32
    %20 = vector.broadcast %c0_i32_7 : i32 to vector<2x128xi32>
    %21 = arith.maxsi %20, %4 : vector<2x128xi32>
    %22 = vector.broadcast %c3_i32 : i32 to vector<2x128xi32>
    %23 = arith.minsi %22, %21 : vector<2x128xi32>
    %24 = vector.shape_cast %23 : vector<2x128xi32> to vector<2x1x128xi32>
    %25 = vector.broadcast %24 : vector<2x1x128xi32> to vector<2x4x128xi32>
    %26 = vector.broadcast %19 : vector<1x4x1xi32> to vector<2x4x128xi32>
    %27 = arith.cmpi eq, %25, %26 : vector<2x4x128xi32>
    %c255_i32 = arith.constant 255 : i32
    %28 = vector.broadcast %c255_i32 : i32 to vector<2x128xi32>
    %29 = arith.cmpi ne, %4, %28 : vector<2x128xi32>
    %30 = vector.shape_cast %29 : vector<2x128xi1> to vector<2x1x128xi1>
    %31 = arith.mulf %18, %18 : vector<2x4x128xf32>
    %32 = vector.broadcast %30 : vector<2x1x128xi1> to vector<2x4x128xi1>
    %33 = arith.andi %27, %32 : vector<2x4x128xi1>
    %c0_i32_8 = arith.constant 0 : i32
    %34 = arith.sitofp %c0_i32_8 : i32 to f32
    %35 = vector.broadcast %34 : f32 to vector<2x4x128xf32>
    %36 = arith.select %33, %18, %35 : vector<2x4x128xi1>, vector<2x4x128xf32>
    %cst_9 = arith.constant dense<0.000000e+00> : vector<2x4xf32>
    %37 = vector.multi_reduction <add>, %36, %cst_9 [2] : vector<2x4x128xf32> to vector<2x4xf32>
    %cst_10 = arith.constant 1.000000e+00 : f32
    %cst_11 = arith.constant 0.000000e+00 : f32
    %38 = vector.broadcast %cst_10 : f32 to vector<2x4x128xf32>
    %39 = vector.broadcast %cst_11 : f32 to vector<2x4x128xf32>
    %40 = arith.select %27, %38, %39 : vector<2x4x128xi1>, vector<2x4x128xf32>
    %41 = arith.addf %31, %40 : vector<2x4x128xf32>
    %cst_12 = arith.constant dense<0.000000e+00> : vector<2x4xf32>
    %42 = vector.multi_reduction <add>, %41, %cst_12 [2] : vector<2x4x128xf32> to vector<2x4xf32>
    %c0_13 = arith.constant 0 : index
    %c0_14 = arith.constant 0 : index
    %c0_15 = arith.constant 0 : index
    %43 = vector.load %arg4[%c0_13, %c0_14, %c0_15] : memref<1x2x4xf32, #tpu.memory_space<vmem>>, vector<1x2x4xf32>
    %44 = vector.shape_cast %37 : vector<2x4xf32> to vector<1x2x4xf32>
    %45 = arith.addf %43, %44 : vector<1x2x4xf32>
    %c0_16 = arith.constant 0 : index
    %c0_17 = arith.constant 0 : index
    %c0_18 = arith.constant 0 : index
    %46 = vector.load %arg4[%c0_16, %c0_17, %c0_18] : memref<1x2x4xf32, #tpu.memory_space<vmem>>, vector<1x2x4xf32>
    tpu.vector_store %arg4[%c0_16, %c0_17, %c0_18], %45 {strides = array<i32>} : memref<1x2x4xf32, #tpu.memory_space<vmem>>, vector<1x2x4xf32>,
    %c0_19 = arith.constant 0 : index
    %c0_20 = arith.constant 0 : index
    %c0_21 = arith.constant 0 : index
    %47 = vector.load %arg5[%c0_19, %c0_20, %c0_21] : memref<1x2x4xf32, #tpu.memory_space<vmem>>, vector<1x2x4xf32>
    %48 = vector.shape_cast %42 : vector<2x4xf32> to vector<1x2x4xf32>
    %49 = arith.addf %47, %48 : vector<1x2x4xf32>
    %c0_22 = arith.constant 0 : index
    %c0_23 = arith.constant 0 : index
    %c0_24 = arith.constant 0 : index
    %50 = vector.load %arg5[%c0_22, %c0_23, %c0_24] : memref<1x2x4xf32, #tpu.memory_space<vmem>>, vector<1x2x4xf32>
    tpu.vector_store %arg5[%c0_22, %c0_23, %c0_24], %49 {strides = array<i32>} : memref<1x2x4xf32, #tpu.memory_space<vmem>>, vector<1x2x4xf32>,
    return
  }
  func.func @transform_0(%arg0: i32, %arg1: i32) -> (i32, i32, i32) {
    %c8_i32 = arith.constant 8 : i32
    %0 = arith.muli %arg0, %c8_i32 : i32
    %1 = arith.addi %0, %arg1 : i32
    %c0_i32 = arith.constant 0 : i32
    %c0_i32_0 = arith.constant 0 : i32
    %c0_i32_1 = arith.constant 0 : i32
    return %c0_i32, %c0_i32_0, %1 : i32, i32, i32
  }
  func.func @transform_1(%arg0: i32, %arg1: i32) -> (i32, i32) {
    %c8_i32 = arith.constant 8 : i32
    %0 = arith.muli %arg0, %c8_i32 : i32
    %1 = arith.addi %0, %arg1 : i32
    %c0_i32 = arith.constant 0 : i32
    %c0_i32_0 = arith.constant 0 : i32
    return %c0_i32, %1 : i32, i32
  }
  func.func @transform_2(%arg0: i32, %arg1: i32) -> (i32, i32, i32) {
    %c0_i32 = arith.constant 0 : i32
    %c0_i32_0 = arith.constant 0 : i32
    %c0_i32_1 = arith.constant 0 : i32
    return %arg0, %c0_i32, %c0_i32_0 : i32, i32, i32
  }
  func.func @transform_3(%arg0: i32, %arg1: i32) -> (i32, i32, i32) {
    %c0_i32 = arith.constant 0 : i32
    %c0_i32_0 = arith.constant 0 : i32
    %c0_i32_1 = arith.constant 0 : i32
    return %arg0, %c0_i32, %c0_i32_0 : i32, i32, i32
  }
}

</mosaic_0001>

<llo_original>
// kernel: tpu_custom_call.1
$region0: #{tpu_custom_call.1}
  #allocation0 [shape = 'u32[]', space=smem, size = 0x4, offset = 0x4, fixed_abs, tag = 'smem constant byte address 0x4 - core index']
  #allocation1 [shape = 'u32[144,128]{1,0:T(1,128)}', space=vmem, size = 0x12000, scoped, tag = 'internal scratch']
  %s0 = inlined_call_operand.hbm [shape: f32[2,4,1024], index: 0, kind: input, shape index: {}]
  %s1 = inlined_call_operand.hbm [shape: s32[2,1024], index: 1, kind: input, shape index: {}]
  %s2 = inlined_call_operand.hbm [shape: f32[1,2,4], index: 2, kind: output, shape index: {0}]
  %s3 = inlined_call_operand.hbm [shape: f32[1,2,4], index: 3, kind: output, shape index: {1}]
  %4 = xla_tuple %s2, %s3
  %s5 = sld [smem:[#allocation0]]
  $region61: #{tpu_custom_call.1} parent=0
    _
  %s7 = ssub.s32 1, %s5
  %s8 = scalar_select 0, %s7, %s5
  $region1: #{tpu_custom_call.1} parent=0
    #allocation2 [shape = 'u8[8192]{0}', space=vmem, size = 0x2000, scoped, tag = 'input window, operand 0']
    #allocation3 [shape = 's32[2]{0}', space=sflag, size = 0x8, scoped, tag = 'scoped memory for tpu_custom_call.1']
    #allocation4 [shape = 's32[2]{0}', space=sflag, size = 0x8, scoped, tag = 'scoped memory for tpu_custom_call.1']
    #allocation5 [shape = 'u8[2048]{0}', space=vmem, size = 0x800, scoped, tag = 'input window, operand 1']
    #allocation6 [shape = 's32[2]{0}', space=sflag, size = 0x8, scoped, tag = 'scoped memory for tpu_custom_call.1']
    #allocation7 [shape = 'u8[1024]{0}', space=vmem, size = 0x400, scoped, tag = 'output window, operand 0, single buffered']
    #allocation8 [shape = 'u8[1024]{0}', space=vmem, size = 0x400, scoped, tag = 'output window, operand 1, single buffered']
    #allocation9 [shape = 's32[1]{0}', space=sflag, size = 0x4, scoped, tag = 'scoped memory for tpu_custom_call.1']
    %9 = vsyncpa [#allocation3], 0
    %s10 = scalar_lea.sflag [#allocation3], 1
    %11 = vsyncpa %s10, 0
    %12 = vsyncpa [#allocation6], 0
    %s13 = scalar_lea.sflag [#allocation6], 1
    %14 = vsyncpa %s13, 0
    %15 = vsyncpa [#allocation4], 0
    %16 = vsyncpa [#allocation9], 0
    loop: start=0, step=1, limit=10
    $region2: #{tpu_custom_call.1} parent=1 // loop_pre_header
      _
    $region3: #{tpu_custom_call.1} parent=1 // loop_header
      %s18 = sphi 0, %s22
      %p19 = scmp.ge.s32.totalorder %s18, 10
      %s25 = sphi 0, %s37
      %s26 = sphi 0, %s33
      %s27 = sphi 0, %s25
      %s28 = sphi 0, %s26
      %s29 = sphi 0, %s27
      %s30 = sphi 0, %s28
      %s44 = sphi 0, %s46
      %s47 = sphi 0, %s44
      %s48 = sphi 0, %s47
      %s64 = sphi 0, %s48
      %s74 = sphi 0, %s76
      %s77 = sphi 0, %s74
      %s78 = sphi 0, %s77
      %s94 = sphi 0, %s78
      %s100 = sphi 0, %s102
      %s103 = sphi 0, %s100
      %s104 = sphi 0, %s103
      %s120 = sphi 0, %s104
      %s126 = sphi 0, %s128
      %s129 = sphi 0, %s126
      %s130 = sphi 0, %s129
      %s146 = sphi 0, %s130
    $region4: #{tpu_custom_call.1} parent=1 // loop_header_branch
      %21 = sbr.rel (%p19) target = $region8
    $region5: #{tpu_custom_call.1} parent=1 // loop_body
      %s23 = ssub.s32 %s18, 1
      %s24 = ssub.s32 %s18, 2
      %s31 = sadd.s32 1, %s26
      %p32 = scmp.ge.s32.totalorder %s31, 8
      %s33 = scalar_select %p32, 0, %s31
      %s34 = sadd.s32 1, %s25
      %s35 = scalar_select %p32, %s34, %s25
      %p36 = scmp.ge.s32.totalorder %s35, 1
      %s37 = scalar_select %p36, 0, %s35
      %s38 = smul.u32 %s25, 8
      %s39 = sadd.s32 %s38, %s26
      %s40 = smul.u32 %s37, 8
      %s41 = sadd.s32 %s40, %s33
      %s42 = ssub.s32 %s39, %s41
      %p43 = scmp.eq.s32.totalorder %s42, 0
      %s45 = sadd.s32 %s44, 1
      %s46 = scalar_select %p43, %s44, %s45
      %p49 = pneg %p43
      %p50 = scmp.eq.s32.totalorder %s18, 7
      %p51 = por %p49, %p50
      %p52 = scmp.ne.s32.totalorder %s44, %s47
      %p53 = scmp.eq.s32.totalorder %s18, 0
      %p54 = por %p52, %p53
      %p55 = scmp.ne.s32.totalorder %s44, %s47
      %p56 = scmp.eq.s32.totalorder %s23, 7
      %p57 = por %p55, %p56
      %p58 = scmp.ne.s32.totalorder %s47, %s48
      %p59 = scmp.eq.s32.totalorder %s23, 0
      %p60 = por %p58, %p59
      %p61 = scmp.ne.s32.totalorder %s47, %s48
      %p62 = scmp.eq.s32.totalorder %s24, 7
      %p63 = por %p61, %p62
      %p65 = scmp.ne.s32.totalorder %s48, %s64
      %p66 = scmp.eq.s32.totalorder %s24, 0
      %p67 = por %p65, %p66
      %s68 = smul.u32 %s25, 8
      %s69 = sadd.s32 %s68, %s26
      %s70 = smul.u32 %s37, 8
      %s71 = sadd.s32 %s70, %s33
      %s72 = ssub.s32 %s69, %s71
      %p73 = scmp.eq.s32.totalorder %s72, 0
      %s75 = sadd.s32 %s74, 1
      %s76 = scalar_select %p73, %s74, %s75
      %p79 = pneg %p73
      %p80 = scmp.eq.s32.totalorder %s18, 7
      %p81 = por %p79, %p80
      %p82 = scmp.ne.s32.totalorder %s74, %s77
      %p83 = scmp.eq.s32.totalorder %s18, 0
      %p84 = por %p82, %p83
      %p85 = scmp.ne.s32.totalorder %s74, %s77
      %p86 = scmp.eq.s32.totalorder %s23, 7
      %p87 = por %p85, %p86
      %p88 = scmp.ne.s32.totalorder %s77, %s78
      %p89 = scmp.eq.s32.totalorder %s23, 0
      %p90 = por %p88, %p89
      %p91 = scmp.ne.s32.totalorder %s77, %s78
      %p92 = scmp.eq.s32.totalorder %s24, 7
      %p93 = por %p91, %p92
      %p95 = scmp.ne.s32.totalorder %s78, %s94
      %p96 = scmp.eq.s32.totalorder %s24, 0
      %p97 = por %p95, %p96
      %s98 = ssub.s32 %s25, %s37
      %p99 = scmp.eq.s32.totalorder %s98, 0
      %s101 = sadd.s32 %s100, 1
      %s102 = scalar_select %p99, %s100, %s101
      %p105 = pneg %p99
      %p106 = scmp.eq.s32.totalorder %s18, 7
      %p107 = por %p105, %p106
      %p108 = scmp.ne.s32.totalorder %s100, %s103
      %p109 = scmp.eq.s32.totalorder %s18, 0
      %p110 = por %p108, %p109
      %p111 = scmp.ne.s32.totalorder %s100, %s103
      %p112 = scmp.eq.s32.totalorder %s23, 7
      %p113 = por %p111, %p112
      %p114 = scmp.ne.s32.totalorder %s103, %s104
      %p115 = scmp.eq.s32.totalorder %s23, 0
      %p116 = por %p114, %p115
      %p117 = scmp.ne.s32.totalorder %s103, %s104
      %p118 = scmp.eq.s32.totalorder %s24, 7
      %p119 = por %p117, %p118
      %p121 = scmp.ne.s32.totalorder %s104, %s120
      %p122 = scmp.eq.s32.totalorder %s24, 0
      %p123 = por %p121, %p122
      %s124 = ssub.s32 %s25, %s37
      %p125 = scmp.eq.s32.totalorder %s124, 0
      %s127 = sadd.s32 %s126, 1
      %s128 = scalar_select %p125, %s126, %s127
      %p131 = pneg %p125
      %p132 = scmp.eq.s32.totalorder %s18, 7
      %p133 = por %p131, %p132
      %p134 = scmp.ne.s32.totalorder %s126, %s129
      %p135 = scmp.eq.s32.totalorder %s18, 0
      %p136 = por %p134, %p135
      %p137 = scmp.ne.s32.totalorder %s126, %s129
      %p138 = scmp.eq.s32.totalorder %s23, 7
      %p139 = por %p137, %p138
      %p140 = scmp.ne.s32.totalorder %s129, %s130
      %p141 = scmp.eq.s32.totalorder %s23, 0
      %p142 = por %p140, %p141
      %p143 = scmp.ne.s32.totalorder %s129, %s130
      %p144 = scmp.eq.s32.totalorder %s24, 7
      %p145 = por %p143, %p144
      %p147 = scmp.ne.s32.totalorder %s130, %s146
      %p148 = scmp.eq.s32.totalorder %s24, 0
      %p149 = por %p147, %p148
      %p150 = scmp.le.s32.totalorder 1, %s18
      %p151 = scmp.lt.s32.totalorder %s18, 9
      %p152 = pnand %p150, %p151
      %p153 = pneg %p152
      // Predicated region
      $region9: #{tpu_custom_call.1} parent=5 // pred_check
        _
      $region10: #{tpu_custom_call.1} parent=5 // pred_check_branch
        %155 = sbr.rel (%p152) target = $region12
      $region11: #{tpu_custom_call.1} parent=5 // pred_region
        %s156 = ssub.s32 %s18, 1
      $region12: #{tpu_custom_call.1} parent=5 // pred_fallthru
        _
      %p157 = scmp.lt.s32.totalorder %s18, 8
      // Predicated region
      $region13: #{tpu_custom_call.1} parent=5 // pred_check
        %p158 = pneg %p157
      $region14: #{tpu_custom_call.1} parent=5 // pred_check_branch
        %160 = sbr.rel (%p158) target = $region16
      $region15: #{tpu_custom_call.1} parent=5 // pred_region
        // Predicated region
        $region17: #{tpu_custom_call.1} parent=15 // pred_check
          %p161 = pneg %p54
        $region18: #{tpu_custom_call.1} parent=15 // pred_check_branch
          %163 = sbr.rel (%p161) target = $region20
        $region19: #{tpu_custom_call.1} parent=15 // pred_region
          %s164 = sand.u32 %s44, 1
          %s165 = scalar_lea.sflag [#allocation3], %s164
          %s166 = sand.u32 %s44, 1
          %s167 = smul.addr %s166, 8
          %s168 = scalar_lea.vmem [#allocation2], %s167
          %s169 = smul.u32 %s25, 8
          %s170 = sadd.s32 %s169, %s26
          %s172 = ssub.s32 128, 128
          %173 = vsyncadd %s165, %s172
          %s174 = smul.addr %s170, 64
          %s175 = scalar_lea.hbm %s0, %s174
          %s176 = sshll.u32 %s168, 4
          %s177 = int_to_ptr.vmem [resolvable:$true] %s176
          %182 = dma.hbm_to_vmem [thread:$0]  %s175, 128, %s177, %s165, 512, 64, 4
        $region20: #{tpu_custom_call.1} parent=15 // pred_fallthru
          _
        // Predicated region
        $region21: #{tpu_custom_call.1} parent=15 // pred_check
          %p183 = pneg %p84
        $region22: #{tpu_custom_call.1} parent=15 // pred_check_branch
          %185 = sbr.rel (%p183) target = $region24
        $region23: #{tpu_custom_call.1} parent=15 // pred_region
          %s186 = sand.u32 %s74, 1
          %s187 = scalar_lea.sflag [#allocation6], %s186
          %s188 = sand.u32 %s74, 1
          %s189 = smul.addr %s188, 2
          %s190 = scalar_lea.vmem [#allocation5], %s189
          %s191 = smul.u32 %s25, 8
          %s192 = sadd.s32 %s191, %s26
          %s194 = ssub.s32 32, 32
          %195 = vsyncadd %s187, %s194
          %s196 = smul.addr %s192, 32
          %s197 = scalar_lea.hbm %s1, %s196
          %s199 = sshll.u32 %s190, 4
          %s200 = int_to_ptr.vmem [resolvable:$true] %s199
          %202 = dma.hbm_to_vmem [thread:$0]  %s197, 32, %s200, %s187
        $region24: #{tpu_custom_call.1} parent=15 // pred_fallthru
          _
      $region16: #{tpu_custom_call.1} parent=5 // pred_fallthru
        _
      %p203 = scmp.le.s32.totalorder 1, %s18
      %p204 = scmp.lt.s32.totalorder %s18, 9
      %p205 = pnand %p203, %p204
      %p206 = pneg %p205
      // Predicated region
      $region25: #{tpu_custom_call.1} parent=5 // pred_check
        _
      $region26: #{tpu_custom_call.1} parent=5 // pred_check_branch
        %208 = sbr.rel (%p205) target = $region28
      $region27: #{tpu_custom_call.1} parent=5 // pred_region
        %s209 = ssub.s32 %s18, 1
        %s210 = sand.u32 %s47, 1
        %s211 = scalar_lea.sflag [#allocation3], %s210
        %s212 = sand.u32 %s47, 1
        %s213 = smul.addr %s212, 8
        %s214 = scalar_lea.vmem [#allocation2], %s213
        // Predicated region
        $region29: #{tpu_custom_call.1} parent=27 // pred_check
          %p215 = pneg %p60
        $region30: #{tpu_custom_call.1} parent=27 // pred_check_branch
          %217 = sbr.rel (%p215) target = $region32
        $region31: #{tpu_custom_call.1} parent=27 // pred_region
          %218 = dma.done %s211, 128
        $region32: #{tpu_custom_call.1} parent=27 // pred_fallthru
          _
        %s219 = sand.u32 %s77, 1
        %s220 = scalar_lea.sflag [#allocation6], %s219
        %s221 = sand.u32 %s77, 1
        %s222 = smul.addr %s221, 2
        %s223 = scalar_lea.vmem [#allocation5], %s222
        // Predicated region
        $region33: #{tpu_custom_call.1} parent=27 // pred_check
          %p224 = pneg %p90
        $region34: #{tpu_custom_call.1} parent=27 // pred_check_branch
          %226 = sbr.rel (%p224) target = $region36
        $region35: #{tpu_custom_call.1} parent=27 // pred_region
          %227 = dma.done %s220, 32
        $region36: #{tpu_custom_call.1} parent=27 // pred_fallthru
          _
        %s228 = sand.u32 %s47, 1
        %s229 = scalar_lea.sflag [#allocation3], %s228
        %s230 = sand.u32 %s47, 1
        %s231 = smul.addr %s230, 8
        %s232 = scalar_lea.vmem [#allocation2], %s231
        %p233 = pneg %p60
        %p234 = pneg %p57
        %s235 = sand.u32 %s77, 1
        %s236 = scalar_lea.sflag [#allocation6], %s235
        %s237 = sand.u32 %s77, 1
        %s238 = smul.addr %s237, 2
        %s239 = scalar_lea.vmem [#allocation5], %s238
        %p240 = pneg %p90
        %p241 = pneg %p87
        %p242 = pneg %p116
        %p243 = pneg %p113
        %p244 = pneg %p142
        %p245 = pneg %p139
        %s246 = smul.u32 %s27, 8
        %s247 = sadd.s32 %s246, %s28
        %s248 = smul.u32 %s27, 8
        %s249 = sadd.s32 %s248, %s28
        %p250 = scmp.eq.s32.totalorder %s28, 0
        // Predicated region
        $region37: #{tpu_custom_call.1} parent=27 // pred_check
          %p251 = pneg %p250
        $region38: #{tpu_custom_call.1} parent=27 // pred_check_branch
          %253 = sbr.rel (%p251) target = $region40
        $region39: #{tpu_custom_call.1} parent=27 // pred_region
          %vm254 = vcmask 25600
          %255 = vst.msk [vmem:[#allocation7] sm:$0x3] %vm254, 0.0
          %256 = vst.msk [vmem:[#allocation8] sm:$0x3] %vm254, 0.0
        $region40: #{tpu_custom_call.1} parent=27 // pred_fallthru
          _
        %v257 = vld [vmem:[%s214] sm:$0xf]
        %v258 = vld [vmem:[%s214 + $0x4] sm:$0xf]
        %v259 = vld [vmem:[%s223] sm:$0x3]
        %vm260 = vcmask 1043456
        %v261 = vsel %vm260, %v257, -inf
        %v262 = vrot.slane %v261, 4
        %v263 = vmax.f32 %v261, %v262
        %v264 = vrot.slane %v263, 2
        %v265 = vmax.f32 %v263, %v264
        %v266 = vrot.slane %v265, 1
        %v267 = vmax.f32 %v265, %v266
        %v268 = vsel %vm260, %v258, -inf
        %v269 = vrot.slane %v268, 4
        %v270 = vmax.f32 %v268, %v269
        %v271 = vrot.slane %v270, 2
        %v272 = vmax.f32 %v270, %v271
        %v273 = vrot.slane %v272, 1
        %v274 = vmax.f32 %v272, %v273
        %v275 = vsub.f32 %v257, %v267
        %v276 = vsub.f32 %v258, %v274
        %v277 = vmul.f32 %v275, 1.442695
        %v278 = vpow.pop %v277
        %v279 = vmul.f32 %v276, 1.442695
        %v280 = vpow.pop %v279
        %v281 = vsel %vm260, %v278, 0.0
        %v282 = vrot.slane %v281, 4
        %v283 = vadd.f32 %v281, %v282
        %v284 = vrot.slane %v283, 2
        %v285 = vadd.f32 %v283, %v284
        %v286 = vrot.slane %v285, 1
        %v287 = vadd.f32 %v285, %v286
        %v288 = vsel %vm260, %v280, 0.0
        %v289 = vrot.slane %v288, 4
        %v290 = vadd.f32 %v288, %v289
        %v291 = vrot.slane %v290, 2
        %v292 = vadd.f32 %v290, %v291
        %v293 = vrot.slane %v292, 1
        %v294 = vadd.f32 %v292, %v293
        %v295 = vrcp.pop %v287
        %v296 = vrcp.pop %v294
        %v297 = vmul.f32 %v287, %v295
        %v298 = vmul.f32 %v294, %v296
        %v299 = vsub.f32 2.0, %v297
        %v300 = vsub.f32 2.0, %v298
        %v301 = vmul.f32 %v295, %v299
        %v302 = vmul.f32 %v296, %v300
        %v303 = vmul.f32 %v278, %v301
        %v304 = vmul.f32 %v280, %v302
        %v305 = vlaneseq
        %v306 = vshrl.u32 %v305, 7
        %vm307 = vcmp.gt.s32.totalorder %v259, 0
        %v308 = vsel %vm307, %v259, 0
        %vm309 = vcmp.lt.s32.totalorder %v308, 3
        %v310 = vsel %vm309, %v308, 3
        %v312 = vunpack.c.l.s4 1966171168
        %v313 = vunpack.c.0.s8 %v312
        %v314 = vlaneseq
        %v315 = vshrl.u32 %v314, 7
        %v316 = vsub.s32 %v313, %v315
        %v317 = vrot.slane %v310, %v316
        %v318 = vcombine.high %v317, %v317
        %v320 = vunpack.c.l.s4 1966171168
        %v321 = vunpack.c.0.s8 %v320
        %v322 = vlaneseq
        %v323 = vshrl.u32 %v322, 7
        %v324 = vsub.s32 %v321, %v323
        %v325 = vrot.slane %v317, %v324
        %v327 = vunpack.c.l.s4 1966171168
        %v328 = vunpack.c.0.s8 %v327
        %v329 = vlaneseq
        %v330 = vshrl.u32 %v329, 7
        %v331 = vsub.s32 %v328, %v330
        %v332 = vrot.slane %v318, %v331
        %v333 = vlaneseq
        %v334 = vshrl.u32 %v333, 7
        %v335 = vsub.s32 0, %v334
        %v336 = vrot.slane %v325, %v335
        %v337 = vlaneseq
        %v338 = vshrl.u32 %v337, 7
        %v339 = vsub.s32 0, %v338
        %v340 = vrot.slane %v332, %v339
        %vm341 = vcmp.eq.s32.totalorder %v336, %v306
        %vm342 = vcmp.eq.s32.totalorder %v340, %v306
        %vm343 = vcmp.ne.s32.totalorder %v259, 255
        %v344 = vsel %vm343, 1, 0
        %v346 = vunpack.c.l.s4 1966171168
        %v347 = vunpack.c.0.s8 %v346
        %v348 = vlaneseq
        %v349 = vshrl.u32 %v348, 7
        %v350 = vsub.s32 %v347, %v349
        %v351 = vrot.slane %v344, %v350
        %v352 = vcombine.high %v351, %v351
        %v354 = vunpack.c.l.s4 1966171168
        %v355 = vunpack.c.0.s8 %v354
        %v356 = vlaneseq
        %v357 = vshrl.u32 %v356, 7
        %v358 = vsub.s32 %v355, %v357
        %v359 = vrot.slane %v351, %v358
        %v361 = vunpack.c.l.s4 1966171168
        %v362 = vunpack.c.0.s8 %v361
        %v363 = vlaneseq
        %v364 = vshrl.u32 %v363, 7
        %v365 = vsub.s32 %v362, %v364
        %v366 = vrot.slane %v352, %v365
        %vm367 = vcmp.ne.s32.totalorder %v359, 0
        %vm368 = vcmp.ne.s32.totalorder %v366, 0
        %v369 = vmul.f32 %v303, %v303
        %v370 = vmul.f32 %v304, %v304
        %v371 = vsel %vm367, 1, 0
        %v372 = vsel %vm368, 1, 0
        %v373 = vlaneseq
        %v374 = vshrl.u32 %v373, 7
        %v375 = vsub.s32 0, %v374
        %v376 = vrot.slane %v371, %v375
        %v377 = vlaneseq
        %v378 = vshrl.u32 %v377, 7
        %v379 = vsub.s32 0, %v378
        %v380 = vrot.slane %v372, %v379
        %vm381 = vcmp.eq.s32.totalorder %v376, 1
        %vm382 = vcmp.eq.s32.totalorder %v380, 1
        %vm383 = vmand %vm341, %vm381
        %vm384 = vmand %vm342, %vm382
        %v385 = vsel %vm383, %v303, 0.0
        %v386 = vsel %vm384, %v304, 0.0
        %v387 = vsel %vm260, %v385, 0.0
        %388 = vadd.xlane.f32.xlu0 %v387
        %v389 = vpop.xlane.xlu0 %388
        %v390 = vsel %vm260, %v386, 0.0
        %391 = vadd.xlane.f32.xlu0 %v390
        %v392 = vpop.xlane.xlu0 %391
        %v393 = vsel %vm341, 1.0, 0.0
        %v394 = vsel %vm342, 1.0, 0.0
        %v395 = vadd.f32 %v369, %v393
        %v396 = vadd.f32 %v370, %v394
        %v397 = vsel %vm260, %v395, 0.0
        %398 = vadd.xlane.f32.xlu0 %v397
        %v399 = vpop.xlane.xlu0 %398
        %v400 = vsel %vm260, %v396, 0.0
        %401 = vadd.xlane.f32.xlu0 %v400
        %v402 = vpop.xlane.xlu0 %401
        %v403 = vld [vmem:[#allocation7] sm:$0x3]
        %v406 = vlaneseq
        %v407 = vand.u32 %v406, 127
        %v408 = vlaneseq
        %v409 = vshrl.u32 %v408, 7
        %v410 = vsub.s32 %v407, %v409
        %v411 = vrot.slane %v389, %v410
        %v412 = vlaneseq
        %v413 = vshrl.u32 %v412, 7
        %v414 = vsub.s32 %v407, %v413
        %v415 = vrot.slane %v392, %v414
        %vm416 = vcmask 1041409
        %v417 = vsel %vm416, %v415, %v411
        %v419 = vadd.f32 %v403, %v417
        %vm420 = vcmask 25600
        %421 = vst.msk [vmem:[#allocation7] sm:$0x3] %vm420, %v419
        %v422 = vld [vmem:[#allocation8] sm:$0x3]
        %v425 = vlaneseq
        %v426 = vshrl.u32 %v425, 7
        %v427 = vsub.s32 %v407, %v426
        %v428 = vrot.slane %v399, %v427
        %v429 = vlaneseq
        %v430 = vshrl.u32 %v429, 7
        %v431 = vsub.s32 %v407, %v430
        %v432 = vrot.slane %v402, %v431
        %v433 = vsel %vm416, %v432, %v428
        %v435 = vadd.f32 %v422, %v433
        %436 = vst.msk [vmem:[#allocation8] sm:$0x3] %vm420, %v435
        // Predicated region
        $region41: #{tpu_custom_call.1} parent=27 // pred_check
          %p437 = pneg %p113
        $region42: #{tpu_custom_call.1} parent=27 // pred_check_branch
          %439 = sbr.rel (%p437) target = $region44
        $region43: #{tpu_custom_call.1} parent=27 // pred_region
          %s441 = ssub.s32 32, 32
          %442 = vsyncadd [#allocation4], %s441
          %s443 = smul.addr %s27, 32
          %s444 = scalar_lea.hbm %s2, %s443
          %s446 = sshll.u32 [#allocation7], 4
          %s447 = int_to_ptr.vmem [resolvable:$true] %s446
          %449 = dma.vmem_to_hbm [thread:$0]  %s447, 32, %s444, [#allocation4]
        $region44: #{tpu_custom_call.1} parent=27 // pred_fallthru
          _
        // Predicated region
        $region45: #{tpu_custom_call.1} parent=27 // pred_check
          %p450 = pneg %p139
        $region46: #{tpu_custom_call.1} parent=27 // pred_check_branch
          %452 = sbr.rel (%p450) target = $region48
        $region47: #{tpu_custom_call.1} parent=27 // pred_region
          %s454 = ssub.s32 32, 32
          %455 = vsyncadd [#allocation9], %s454
          %s456 = smul.addr %s27, 32
          %s457 = scalar_lea.hbm %s3, %s456
          %s459 = sshll.u32 [#allocation8], 4
          %s460 = int_to_ptr.vmem [resolvable:$true] %s459
          %462 = dma.vmem_to_hbm [thread:$0]  %s460, 32, %s457, [#allocation9]
        $region48: #{tpu_custom_call.1} parent=27 // pred_fallthru
          _
        // Predicated region
        $region49: #{tpu_custom_call.1} parent=27 // pred_check
          %p463 = pneg %p113
        $region50: #{tpu_custom_call.1} parent=27 // pred_check_branch
          %465 = sbr.rel (%p463) target = $region52
        $region51: #{tpu_custom_call.1} parent=27 // pred_region
          %466 = dma.done [#allocation4], 32
        $region52: #{tpu_custom_call.1} parent=27 // pred_fallthru
          _
        // Predicated region
        $region53: #{tpu_custom_call.1} parent=27 // pred_check
          %p467 = pneg %p139
        $region54: #{tpu_custom_call.1} parent=27 // pred_check_branch
          %469 = sbr.rel (%p467) target = $region56
        $region55: #{tpu_custom_call.1} parent=27 // pred_region
          %470 = dma.done [#allocation9], 32
        $region56: #{tpu_custom_call.1} parent=27 // pred_fallthru
          _
      $region28: #{tpu_custom_call.1} parent=5 // pred_fallthru
        _
      %p471 = scmp.le.s32.totalorder 2, %s18
      // Predicated region
      $region57: #{tpu_custom_call.1} parent=5 // pred_check
        %p472 = pneg %p471
      $region58: #{tpu_custom_call.1} parent=5 // pred_check_branch
        %474 = sbr.rel (%p472) target = $region60
      $region59: #{tpu_custom_call.1} parent=5 // pred_region
        %s475 = ssub.s32 %s18, 2
      $region60: #{tpu_custom_call.1} parent=5 // pred_fallthru
        _
    $region6: #{tpu_custom_call.1} parent=1 // loop_footer
      %s22 = sadd.s32 1, %s18
    $region7: #{tpu_custom_call.1} parent=1 // loop_footer_branch
      %17 = sbr.rel target = $region3
    $region8: #{tpu_custom_call.1} parent=1 // loop_exit
      _
    %476 = vsyncpa [#allocation3], 1
    %s477 = scalar_lea.sflag [#allocation3], 1
    %478 = vsyncpa %s477, 1
    %479 = vsyncpa [#allocation6], 1
    %s480 = scalar_lea.sflag [#allocation6], 1
    %481 = vsyncpa %s480, 1
    %482 = vsyncpa [#allocation4], 1
    %s483 = scalar_lea.sflag [#allocation4], 1
    %484 = vsyncpa %s483, 1
    %485 = vsyncpa [#allocation9], 1

</llo_original>
